<compile_context>
chip_gen: v7x
topology: tpu7x:2x2x1
jax: 0.10.0
libtpu: 0.0.40
codegen_flags: <defaults>
</compile_context>

<pallas_src>
import math
import jax
import jax.numpy as jnp
from jax.experimental import pallas as pl
from jax.experimental.pallas import tpu as pltpu


EPS = 1e-6
SOFTPLUS_THRESHOLD = 20.0  # matches torch.nn.functional.softplus default


def _dirichlet_forward_kernel(x1_ref, x2_ref, w_ref, b_ref, out_ref):
    # Sum of representations (the module does `sum(representations)`).
    # NOTE: in the bf16 path this sum is bf16 (extra rounding vs PyTorch's f32
    # sum-then-linear); covered by the looser tolerance in the test below.
    x = x1_ref[...] + x2_ref[...]
    # Linear layer: [tm, dmodel] @ [dmodel, N] + bias[1, N] on the MXU, f32 accumulate.
    z = jnp.dot(x, w_ref[...], preferred_element_type=jnp.float32) + b_ref[...]
    # PyTorch softplus (beta=1, threshold=20): z if z > 20 else log1p(exp(z)), in f32.
    safe_z = jnp.minimum(z, SOFTPLUS_THRESHOLD)
    sp = jnp.where(z > SOFTPLUS_THRESHOLD, z, jnp.log1p(jnp.exp(safe_z)))
    out_ref[...] = (sp + EPS).astype(out_ref.dtype)


def _round_up(x, m):
    return ((x + m - 1) // m) * m


def dirichlet_profile_forward(x1, x2, weight, bias, *, tm=512,
                              compute_dtype=jnp.bfloat16,
                              out_dtype=jnp.float32):
    """Fused (x1+x2) @ W + b -> softplus -> +eps.

    Returns the Dirichlet concentration parameters `alphas`, shape [B, N].

    tm:            batch tile.  512 is a good default; it is clamped to the
                   (sublane-aligned) batch size and, when the whole batch fits
                   in one tile, split in two so a v7x chip can use both TCs.
    compute_dtype: dtype for x1/x2/weight DMA + MXU inputs (default bf16 -- the
                   MXU truncates to bf16 internally anyway).  Pass jnp.float32
                   for bit-exact f32 input handling.
    out_dtype:     dtype of the stored alphas (the dominant HBM traffic).
                   Softplus math is always f32; only the final store narrows.
    """
    B, dmodel = x1.shape
    _, N = weight.shape

    if compute_dtype is not None and x1.dtype != compute_dtype:
        x1 = x1.astype(compute_dtype)
        x2 = x2.astype(compute_dtype)
        weight = weight.astype(compute_dtype)

    # Sublane packing: bf16 packs (16, 128) per vreg, f32 packs (8, 128).
    align = 16 if x1.dtype == jnp.bfloat16 else 8

    # Clamp the batch tile to the batch; never below one packed sublane group.
    tm = max(align, min(tm, _round_up(B, align)))

    # If a single grid step would cover the whole batch but the batch is big
    # enough to split, halve the tile so the "parallel" axis has >=2 steps
    # (keeps both v7x TensorCores and their DMA streams busy; harmless on
    # single-TC v5e/v6e since per-step overhead is ~0.35 us).
    if B <= tm:
        half = _round_up((B + 1) // 2, align)
        if half < B:
            tm = half

    grid = (pl.cdiv(B, tm),)  # partial last block handled by Pallas (masked writeback)

    bias2d = bias.reshape(1, N).astype(jnp.float32)

    out = pl.pallas_call(
        _dirichlet_forward_kernel,
        out_shape=jax.ShapeDtypeStruct((B, N), out_dtype),
        grid_spec=pltpu.PrefetchScalarGridSpec(
            num_scalar_prefetch=0,
            grid=grid,  # single batch axis; weight/bias stay VMEM-resident
            in_specs=[
                pl.BlockSpec((tm, dmodel), lambda i: (i, 0)),
                pl.BlockSpec((tm, dmodel), lambda i: (i, 0)),
                pl.BlockSpec((dmodel, N), lambda i: (0, 0)),  # full weight, constant index
                pl.BlockSpec((1, N), lambda i: (0, 0)),       # full bias, constant index
            ],
            out_specs=pl.BlockSpec((tm, N), lambda i: (i, 0)),  # lane-dense full-width output
        ),
        compiler_params=pltpu.CompilerParams(
            dimension_semantics=("parallel",)
        ),
    )(x1, x2, weight, bias2d)

    return out


def preprocess_concentration(concentration_vector):
    """__init__-time buffer preprocessing (plain JAX glue, not part of forward)."""
    q99 = jnp.quantile(concentration_vector, 0.99)  # 'linear' matches torch.quantile default
    cv = jnp.where(concentration_vector > q99,
                   concentration_vector * 40.0,
                   concentration_vector)
    cv = cv / cv.max()
    return cv


def reference_forward(x1, x2, weight, bias):
    z = (x1 + x2) @ weight + bias
    sp = jnp.where(z > SOFTPLUS_THRESHOLD, z,
                   jnp.log1p(jnp.exp(jnp.minimum(z, SOFTPLUS_THRESHOLD))))
    return sp + EPS


if __name__ == "__main__":
    # Small shapes consistent with the module:
    #   input_shape = (2, 8, 8) -> num_components = 2 * 8 * 8 = 128
    #   dmodel = 32, batch = 8, two representations that get summed.
    B, dmodel = 8, 32
    input_shape = (2, 8, 8)
    num_components = input_shape[0] * input_shape[1] * input_shape[2]  # 128

    key = jax.random.PRNGKey(0)
    k1, k2, k3, k4, k5 = jax.random.split(key, 5)

    # Deterministic synthetic parameters (torch Linear init style: U(-1/sqrt(in), 1/sqrt(in)))
    bound = 1.0 / math.sqrt(dmodel)
    weight = jax.random.uniform(k1, (dmodel, num_components), jnp.float32, -bound, bound)
    bias = jax.random.uniform(k2, (num_components,), jnp.float32, -bound, bound)

    # Concentration buffer (init-time preprocessing reproduced, not used in forward)
    concentration_vector = jax.random.uniform(k5, (num_components,), jnp.float32, 0.01, 1.0)
    concentration = preprocess_concentration(concentration_vector)

    # Two representations to be summed (forward supports *representations)
    x1 = jax.random.normal(k3, (B, dmodel), jnp.float32)
    x2 = jax.random.normal(k4, (B, dmodel), jnp.float32)

    ref = reference_forward(x1, x2, weight, bias)

    # --- default path: bf16 inputs/weight (DMA-trimmed), f32 accumulate/epilogue/out ---
    alphas = jax.block_until_ready(dirichlet_profile_forward(x1, x2, weight, bias))
    assert alphas.shape == (B, num_components)
    assert alphas.dtype == jnp.float32
    assert bool(jnp.all(alphas > 0.0))  # valid Dirichlet concentrations
    assert jnp.allclose(alphas, ref, rtol=3e-2, atol=3e-2)

    # --- strict f32 path (bit-level reference check) ---
    alphas_f32 = jax.block_until_ready(
        dirichlet_profile_forward(x1, x2, weight, bias, compute_dtype=jnp.float32))
    assert jnp.allclose(alphas_f32, ref, rtol=1e-5, atol=1e-5)

    # --- partial-last-block path: batch not a multiple of the tile, no host pad/slice ---
    Bp = 12
    kx, ky = jax.random.split(jax.random.PRNGKey(1))
    xp1 = jax.random.normal(kx, (Bp, dmodel), jnp.float32)
    xp2 = jax.random.normal(ky, (Bp, dmodel), jnp.float32)
    alphas_p = jax.block_until_ready(
        dirichlet_profile_forward(xp1, xp2, weight, bias, tm=8, compute_dtype=jnp.float32))
    ref_p = reference_forward(xp1, xp2, weight, bias)
    assert alphas_p.shape == (Bp, num_components)
    assert jnp.allclose(alphas_p, ref_p, rtol=1e-5, atol=1e-5)

    # --- bf16 output path (halves the dominant alpha store) ---
    alphas_bf16 = jax.block_until_ready(
        dirichlet_profile_forward(x1, x2, weight, bias, out_dtype=jnp.bfloat16))
    assert alphas_bf16.shape == (B, num_components)
    assert alphas_bf16.dtype == jnp.bfloat16
    assert bool(jnp.all(alphas_bf16.astype(jnp.float32) > 0.0))
    assert jnp.allclose(alphas_bf16.astype(jnp.float32), ref, rtol=3e-2, atol=3e-2)

    # TODO(synk): torch.distributions.Dirichlet object construction / rsample /
    # KL divergence against the prior has no Pallas equivalent; the kernel
    # returns the concentration parameters `alphas` that parameterize q_p.
    # (If log(alpha)/alpha0/lgamma terms become the only consumer, fuse them
    # into this kernel's epilogue to skip the full alpha write+read round trip.)

    print("KERNEL_OK")
</pallas_src>

<mosaic_0001>
module attributes {stable_mosaic.version = 11 : i64} {
  func.func @_dirichlet_forward_kernel(%arg0: i32, %arg1: memref<16x32xbf16, #tpu.memory_space<vmem>>, %arg2: memref<16x32xbf16, #tpu.memory_space<vmem>>, %arg3: memref<32x128xbf16, #tpu.memory_space<vmem>>, %arg4: memref<1x128xf32, #tpu.memory_space<vmem>>, %arg5: memref<16x128xf32, #tpu.memory_space<vmem>>) attributes {dimension_semantics = [#tpu.dimension_semantics<parallel>], iteration_bounds = array<i64: 1>, scalar_prefetch = 0 : i64, scratch_operands = 0 : i64, tpu.core_type = #tpu.core_type<tc>, window_params = [{transform_indices = @transform_0, window_bounds = array<i64: 16, 32>}, {transform_indices = @transform_1, window_bounds = array<i64: 16, 32>}, {pipeline_mode = #tpu.pipeline_mode<synchronous>, transform_indices = @transform_2, window_bounds = array<i64: 32, 128>}, {pipeline_mode = #tpu.pipeline_mode<synchronous>, transform_indices = @transform_3, window_bounds = array<i64: 1, 128>}, {transform_indices = @transform_4, window_bounds = array<i64: 16, 128>}]} {
    %c0 = arith.constant 0 : index
    %c0_0 = arith.constant 0 : index
    %0 = vector.load %arg1[%c0, %c0_0] : memref<16x32xbf16, #tpu.memory_space<vmem>>, vector<16x32xbf16>
    %c0_1 = arith.constant 0 : index
    %c0_2 = arith.constant 0 : index
    %1 = vector.load %arg2[%c0_1, %c0_2] : memref<16x32xbf16, #tpu.memory_space<vmem>>, vector<16x32xbf16>
    %2 = arith.addf %0, %1 : vector<16x32xbf16>
    %c0_3 = arith.constant 0 : index
    %c0_4 = arith.constant 0 : index
    %3 = vector.load %arg3[%c0_3, %c0_4] : memref<32x128xbf16, #tpu.memory_space<vmem>>, vector<32x128xbf16>
    %cst = arith.constant dense<0.000000e+00> : vector<16x128xf32>
    %4 = tpu.matmul %2, %3, %cst {dimension_numbers = #tpu.dot_dimension_numbers<[1], [0], [0], [1], [0, 0, 1, 1], [], []>} : vector<16x32xbf16>, vector<32x128xbf16>, vector<16x128xf32> -> vector<16x128xf32>
    %c0_5 = arith.constant 0 : index
    %c0_6 = arith.constant 0 : index
    %5 = vector.load %arg4[%c0_5, %c0_6] : memref<1x128xf32, #tpu.memory_space<vmem>>, vector<1x128xf32>
    %6 = vector.broadcast %5 : vector<1x128xf32> to vector<16x128xf32>
    %7 = arith.addf %4, %6 : vector<16x128xf32>
    %cst_7 = arith.constant 2.000000e+01 : f32
    %8 = vector.broadcast %cst_7 : f32 to vector<16x128xf32>
    %9 = arith.minimumf %7, %8 : vector<16x128xf32>
    %cst_8 = arith.constant 2.000000e+01 : f32
    %10 = vector.broadcast %cst_8 : f32 to vector<16x128xf32>
    %11 = arith.cmpf ogt, %7, %10 : vector<16x128xf32>
    %12 = math.exp %9 : vector<16x128xf32>
    %13 = math.log1p %12 : vector<16x128xf32>
    %14 = arith.select %11, %7, %13 : vector<16x128xi1>, vector<16x128xf32>
    %cst_9 = arith.constant 9.99999997E-7 : f32
    %15 = vector.broadcast %cst_9 : f32 to vector<16x128xf32>
    %16 = arith.addf %14, %15 : vector<16x128xf32>
    %c0_10 = arith.constant 0 : index
    %c0_11 = arith.constant 0 : index
    %17 = vector.load %arg5[%c0_10, %c0_11] : memref<16x128xf32, #tpu.memory_space<vmem>>, vector<16x128xf32>
    tpu.vector_store %arg5[%c0_10, %c0_11], %16 {strides = array<i32>} : memref<16x128xf32, #tpu.memory_space<vmem>>, vector<16x128xf32>,
    return
  }
  func.func @transform_0(%arg0: i32) -> (i32, i32) {
    %c0_i32 = arith.constant 0 : i32
    %c0_i32_0 = arith.constant 0 : i32
    return %arg0, %c0_i32 : i32, i32
  }
  func.func @transform_1(%arg0: i32) -> (i32, i32) {
    %c0_i32 = arith.constant 0 : i32
    %c0_i32_0 = arith.constant 0 : i32
    return %arg0, %c0_i32 : i32, i32
  }
  func.func @transform_2(%arg0: i32) -> (i32, i32) {
    %c0_i32 = arith.constant 0 : i32
    %c0_i32_0 = arith.constant 0 : i32
    %c0_i32_1 = arith.constant 0 : i32
    return %c0_i32, %c0_i32_0 : i32, i32
  }
  func.func @transform_3(%arg0: i32) -> (i32, i32) {
    %c0_i32 = arith.constant 0 : i32
    %c0_i32_0 = arith.constant 0 : i32
    %c0_i32_1 = arith.constant 0 : i32
    return %c0_i32, %c0_i32_0 : i32, i32
  }
  func.func @transform_4(%arg0: i32) -> (i32, i32) {
    %c0_i32 = arith.constant 0 : i32
    %c0_i32_0 = arith.constant 0 : i32
    return %arg0, %c0_i32 : i32, i32
  }
}

</mosaic_0001>

<llo_original>
// kernel: tpu_custom_call.1
$region0: #{tpu_custom_call.1}
  #allocation0 [shape = 'u32[]', space=smem, size = 0x4, offset = 0x4, fixed_abs, tag = 'smem constant byte address 0x4 - core index']
  #allocation1 [shape = 'u32[144,128]{1,0:T(1,128)}', space=vmem, size = 0x12000, scoped, tag = 'internal scratch']
  %s0 = inlined_call_operand.hbm [shape: bf16[8,32], index: 0, kind: input, shape index: {}]
  %s1 = inlined_call_operand.hbm [shape: bf16[8,32], index: 1, kind: input, shape index: {}]
  %s2 = inlined_call_operand.hbm [shape: bf16[32,128], index: 2, kind: input, shape index: {}]
  %s3 = inlined_call_operand.vmem [shape: f32[1,128], index: 3, kind: input, shape index: {}]
  %s4 = inlined_call_operand.hbm [shape: f32[8,128], index: 4, kind: output, shape index: {}]
  %s5 = sld [smem:[#allocation0]]
  $region38: #{tpu_custom_call.1} parent=0
    _
  %s7 = ssub.s32 1, %s5
  %s8 = scalar_select 0, %s7, %s5
  $region1: #{tpu_custom_call.1} parent=0
    #allocation2 [shape = 'u8[4096]{0}', space=vmem, size = 0x1000, scoped, tag = 'input window, operand 0, single buffered']
    #allocation3 [shape = 's32[1]{0}', space=sflag, size = 0x4, scoped, tag = 'scoped memory for tpu_custom_call.1']
    #allocation4 [shape = 's32[1]{0}', space=sflag, size = 0x4, scoped, tag = 'scoped memory for tpu_custom_call.1']
    #allocation5 [shape = 'u8[4096]{0}', space=vmem, size = 0x1000, scoped, tag = 'input window, operand 1, single buffered']
    #allocation6 [shape = 's32[1]{0}', space=sflag, size = 0x4, scoped, tag = 'scoped memory for tpu_custom_call.1']
    #allocation7 [shape = 'u8[8192]{0}', space=vmem, size = 0x2000, scoped, tag = 'input window, operand 2, single buffered']
    #allocation8 [shape = 'u8[8192]{0}', space=vmem, size = 0x2000, scoped, tag = 'output window, operand 0, single buffered']
    %9 = vsyncpa [#allocation3], 0
    %10 = vsyncpa [#allocation6], 0
    %11 = vsyncpa [#allocation4], 0
    // Predicated region
    $region2: #{tpu_custom_call.1} parent=1 // pred_check
      _
    $region3: #{tpu_custom_call.1} parent=1 // pred_check_branch
      %13 = sbr.rel (0) target = $region5
    $region4: #{tpu_custom_call.1} parent=1 // pred_region
      %s15 = ssub.s32 128, 64
      %16 = vsyncadd [#allocation3], %s15
      %s17 = sshll.u32 [#allocation2], 4
      %s18 = int_to_ptr.vmem [resolvable:$true] %s17
      %23 = dma.hbm_to_vmem [thread:$0]  %s0, 64, %s18, [#allocation3], 64, 64, 4
    $region5: #{tpu_custom_call.1} parent=1 // pred_fallthru
      _
    // Predicated region
    $region6: #{tpu_custom_call.1} parent=1 // pred_check
      _
    $region7: #{tpu_custom_call.1} parent=1 // pred_check_branch
      %25 = sbr.rel (0) target = $region9
    $region8: #{tpu_custom_call.1} parent=1 // pred_region
      %s27 = ssub.s32 128, 64
      %28 = vsyncadd [#allocation6], %s27
      %s29 = sshll.u32 [#allocation5], 4
      %s30 = int_to_ptr.vmem [resolvable:$true] %s29
      %35 = dma.hbm_to_vmem [thread:$0]  %s1, 64, %s30, [#allocation6], 64, 64, 4
    $region9: #{tpu_custom_call.1} parent=1 // pred_fallthru
      _
    // Predicated region
    $region10: #{tpu_custom_call.1} parent=1 // pred_check
      _
    $region11: #{tpu_custom_call.1} parent=1 // pred_check_branch
      %37 = sbr.rel (0) target = $region13
    $region12: #{tpu_custom_call.1} parent=1 // pred_region
      %s39 = ssub.s32 256, 256
      %40 = vsyncadd [#allocation6], %s39
      %s41 = sshll.u32 [#allocation7], 4
      %s42 = int_to_ptr.vmem [resolvable:$true] %s41
      %47 = dma.hbm_to_vmem [thread:$0]  %s2, 256, %s42, [#allocation6], 64, 64, 4
    $region13: #{tpu_custom_call.1} parent=1 // pred_fallthru
      _
    // Predicated region
    $region14: #{tpu_custom_call.1} parent=1 // pred_check
      _
    $region15: #{tpu_custom_call.1} parent=1 // pred_check_branch
      %49 = sbr.rel (0) target = $region17
    $region16: #{tpu_custom_call.1} parent=1 // pred_region
      _
    $region17: #{tpu_custom_call.1} parent=1 // pred_fallthru
      _
    // Predicated region
    $region18: #{tpu_custom_call.1} parent=1 // pred_check
      _
    $region19: #{tpu_custom_call.1} parent=1 // pred_check_branch
      %51 = sbr.rel (0) target = $region21
    $region20: #{tpu_custom_call.1} parent=1 // pred_region
      %52 = dma.done [#allocation3], 128
    $region21: #{tpu_custom_call.1} parent=1 // pred_fallthru
      _
    // Predicated region
    $region22: #{tpu_custom_call.1} parent=1 // pred_check
      _
    $region23: #{tpu_custom_call.1} parent=1 // pred_check_branch
      %54 = sbr.rel (0) target = $region25
    $region24: #{tpu_custom_call.1} parent=1 // pred_region
      %55 = dma.done [#allocation6], 128
    $region25: #{tpu_custom_call.1} parent=1 // pred_fallthru
      _
    // Predicated region
    $region26: #{tpu_custom_call.1} parent=1 // pred_check
      _
    $region27: #{tpu_custom_call.1} parent=1 // pred_check_branch
      %57 = sbr.rel (0) target = $region29
    $region28: #{tpu_custom_call.1} parent=1 // pred_region
      %58 = dma.done [#allocation6], 256
    $region29: #{tpu_custom_call.1} parent=1 // pred_fallthru
      _
    %v60 = vld [vmem:[#allocation2] sm:$0xf]
    %v61 = vld [vmem:[#allocation2 + $0x4] sm:$0xf]
    %v62 = vld [vmem:[#allocation5] sm:$0xf]
    %v63 = vld [vmem:[#allocation5 + $0x4] sm:$0xf]
    %v64 = vadd.bf16 %v60, %v62
    %v65 = vadd.bf16 %v61, %v63
    %v66 = vld [vmem:[#allocation7] sm:$0xf]
    %v67 = vld [vmem:[#allocation7 + $0x4] sm:$0xf]
    %v68 = vld [vmem:[#allocation7 + $0x8] sm:$0xf]
    %v69 = vld [vmem:[#allocation7 + $0xc] sm:$0xf]
    %v70 = vld [vmem:[%s3] sm:$0x1]
    %v72 = vlaneseq
    %v73 = vshrl.u32 %v72, 7
    %v74 = vsub.s32 0, %v73
    %v75 = vrot.slane %v70, %v74
    %v79 = vunpack.c.l.b16 %v64
    %v80 = vunpack.c.l.b16 %v65
    %v81 = vpack.c.b16 %v80, %v79
    %v86 = vunpack.c.l.b16 %v66
    %v87 = vunpack.c.l.b16 %v67
    %v88 = vunpack.c.l.b16 %v68
    %v89 = vunpack.c.l.b16 %v69
    %v90 = vpack.c.b16 %v87, %v86
    %v91 = vpack.c.b16 %v89, %v88
    %vm94 = vcmask 261120
    %v96 = vsel %vm94, %v81, 0
    %98 = vmatprep.subr.bf16.mxu0 0
    %99 = vmatpush1.bf16.msra.mxu0 %v90
    %100 = vmatprep.subr.bf16.mxu0 0
    %101 = vmatpush1.bf16.msra.mxu0 %v91
    %102 = vmatprep.subr.bf16.mxu0 0
    %103 = vmatpush1.bf16.msra.mxu0 0
    %104 = vmatprep.subr.bf16.mxu0 0
    %105 = vmatpush1.bf16.msra.mxu0 0
    %106 = vmatprep.subr.bf16.mxu0 0
    %107 = vmatpush1.bf16.msra.mxu0 0
    %108 = vmatprep.subr.bf16.mxu0 0
    %109 = vmatpush1.bf16.msra.mxu0 0
    %110 = vmatprep.subr.bf16.mxu0 0
    %111 = vmatpush1.bf16.msra.mxu0 0
    %112 = vmatprep.subr.bf16.mxu0 0
    %113 = vmatpush1.bf16.msra.mxu0 0
    %114 = vmatprep.subr.bf16.mxu0 0
    %115 = vmatpush1.bf16.msra.mxu0 0
    %116 = vmatprep.subr.bf16.mxu0 0
    %117 = vmatpush1.bf16.msra.mxu0 0
    %118 = vmatprep.subr.bf16.mxu0 0
    %119 = vmatpush1.bf16.msra.mxu0 0
    %120 = vmatprep.subr.bf16.mxu0 0
    %121 = vmatpush1.bf16.msra.mxu0 0
    %122 = vmatprep.subr.bf16.mxu0 0
    %123 = vmatpush1.bf16.msra.mxu0 0
    %124 = vmatprep.subr.bf16.mxu0 0
    %125 = vmatpush1.bf16.msra.mxu0 0
    %126 = vmatprep.subr.bf16.mxu0 0
    %127 = vmatpush1.bf16.msra.mxu0 0
    %128 = vmatprep.subr.bf16.mxu0 0
    %129 = vmatpush1.bf16.msra.mxu0 0
    %130 = vmatprep.mubr.bf16.mxu0 0
    %131 = vmatmul.mubr.bf16.gmra.mrb[0].mxu0 %v96
    %v132 = vpop.f32.mrb[0].mxu0
    %v133 = vadd.f32 %v75, %v132
    %v134 = vpop.f32.mrb[0].mxu0
    %v135 = vpop.f32.mrb[0].mxu0
    %v136 = vadd.f32 %v75, %v135
    %v137 = vpop.f32.mrb[0].mxu0
    %138 = vdwg.mxu0
    %v139 = vmin.f32 %v133, 20.0
    %v140 = vmin.f32 %v136, 20.0
    %vm141 = vcmp.gt.f32.partialorder %v133, 20.0
    %vm142 = vcmp.gt.f32.partialorder %v136, 20.0
    %v143 = vmul.f32 %v139, 1.442695
    %v144 = vpow.pop %v143
    %v145 = vmul.f32 %v140, 1.442695
    %v146 = vpow.pop %v145
    %v147 = vadd.f32 %v144, 1.0
    %v148 = vlog2.pop %v147
    %v149 = vmul.f32 %v148, 0.6931472
    %v150 = vmul.f32 -0.5, %v144
    %v151 = vadd.f32 %v150, 1.0
    %v152 = vmul.f32 %v151, %v144
    %v153 = vand.u32 2147483647, %v144
    %vm154 = vcmp.lt.f32.partialorder %v153, 0.0004427343
    %v155 = vsel %vm154, %v152, %v149
    %v156 = vadd.f32 %v146, 1.0
    %v157 = vlog2.pop %v156
    %v158 = vmul.f32 %v157, 0.6931472
    %v159 = vmul.f32 -0.5, %v146
    %v160 = vadd.f32 %v159, 1.0
    %v161 = vmul.f32 %v160, %v146
    %v162 = vand.u32 2147483647, %v146
    %vm163 = vcmp.lt.f32.partialorder %v162, 0.0004427343
    %v164 = vsel %vm163, %v161, %v158
    %v165 = vsel %vm141, %v133, %v155
    %v166 = vsel %vm142, %v136, %v164
    %v167 = vadd.f32 %v165, 1e-06
    %v168 = vadd.f32 %v166, 1e-06
    %169 = vst [vmem:[#allocation8] sm:$0xff] %v167
    %170 = vst [vmem:[#allocation8 + $0x8] sm:$0xff] %v168
    // Predicated region
    $region30: #{tpu_custom_call.1} parent=1 // pred_check
      _
    $region31: #{tpu_custom_call.1} parent=1 // pred_check_branch
      %172 = sbr.rel (0) target = $region33
    $region32: #{tpu_custom_call.1} parent=1 // pred_region
      %s174 = ssub.s32 256, 128
      %175 = vsyncadd [#allocation4], %s174
      %s176 = sshll.u32 [#allocation8], 4
      %s177 = int_to_ptr.vmem [resolvable:$true] %s176
      %182 = dma.vmem_to_hbm [thread:$0]  %s177, 128, %s4, [#allocation4], 128, 128, 8
    $region33: #{tpu_custom_call.1} parent=1 // pred_fallthru
      _
    // Predicated region
    $region34: #{tpu_custom_call.1} parent=1 // pred_check
      _
    $region35: #{tpu_custom_call.1} parent=1 // pred_check_branch
      %184 = sbr.rel (0) target = $region37
    $region36: #{tpu_custom_call.1} parent=1 // pred_region
      %185 = dma.done [#allocation4], 256
    $region37: #{tpu_custom_call.1} parent=1 // pred_fallthru
      _
    %186 = vsyncpa [#allocation3], 1
    %187 = vsyncpa [#allocation6], 1
    %188 = vsyncpa [#allocation4], 1

</llo_original>
